<compile_context>
chip_gen: v6e
topology: v6e:2x2x1
jax: 0.10.0
libtpu: 0.0.40
codegen_flags: <defaults>
</compile_context>

<pallas_src>
import jax
import jax.numpy as jnp
from jax.experimental import pallas as pl
from jax.experimental.pallas import tpu as pltpu


def mlp_kernel(xt_ref, w1_ref, b1_ref, w2_ref, b2_ref, w3_ref, b3_ref, o_ref):
    # fc1 + ReLU: (h1, feat) @ (feat, tile) -> (h1, tile), f32 accumulation.
    h1 = jnp.dot(w1_ref[...], xt_ref[...], preferred_element_type=jnp.float32)
    h1 = jnp.maximum(h1 + b1_ref[...], 0.0)
    # fc2 + ReLU: (h2, h1) @ (h1, tile) -> (h2, tile).
    h2 = jnp.dot(w2_ref[...], h1.astype(jnp.bfloat16),
                 preferred_element_type=jnp.float32)
    h2 = jnp.maximum(h2 + b2_ref[...], 0.0)
    # fc3 on the MXU: (1, h2) @ (h2, tile) -> (1, tile), lane-dense row.
    z = jnp.dot(w3_ref[...], h2.astype(jnp.bfloat16),
                preferred_element_type=jnp.float32) + b3_ref[...]
    # Exact sigmoid (exp + exact reciprocal); EUP slot has enormous slack.
    o_ref[...] = (1.0 / (1.0 + jnp.exp(-z))).astype(o_ref.dtype)


def _pick_block_batch(batch):
    # Big tiles amortize the ~0.35us/grid-step overhead.  Cap at 8192 rows
    # (x tile + f32 h1/h2 activations + casts ~ 8 MiB, under the 16 MiB v5e
    # scoped-VMEM default; v6e/v7x have >= 32 MiB scoped).  For batches that
    # fit under the cap, keep >= 2 grid steps so v7x's two TensorCores both
    # get work (harmless on v5e/v6e).
    lanes, cap = 128, 8192
    if batch <= lanes:
        return lanes
    half_up = ((pl.cdiv(batch, 2) + lanes - 1) // lanes) * lanes
    return min(cap, half_up)


def mlp_forward(x, w1, b1, w2, b2, w3, b3, *, block_batch=None):
    batch, feat = x.shape
    hidden1, hidden2, out_dim = w1.shape[0], w2.shape[0], w3.shape[0]  # 128,64,1

    if block_batch is None:
        block_batch = _pick_block_batch(batch)
    block_batch = max(128, ((block_batch + 127) // 128) * 128)  # lane-aligned
    padded = pl.cdiv(batch, block_batch) * block_batch

    # Transposed, bf16 input: (feat, batch) so batch rides the lane axis.  The
    # transpose is one layout-plumbing HBM pass; the (rare) ragged-batch pad is
    # fused into that same copy by XLA rather than adding a second pass.
    xt = jnp.transpose(x).astype(jnp.bfloat16)
    if padded != batch:
        xt = jnp.pad(xt, ((0, 0), (0, padded - batch)))

    w1_bf = w1.astype(jnp.bfloat16)                     # (128, feat)
    w2_bf = w2.astype(jnp.bfloat16)                     # (64, 128)
    w3_bf = w3.astype(jnp.bfloat16)                     # (1, 64)
    b1c = jnp.reshape(b1, (hidden1, 1)).astype(jnp.float32)
    b2c = jnp.reshape(b2, (hidden2, 1)).astype(jnp.float32)
    b3c = jnp.reshape(b3, (out_dim, 1)).astype(jnp.float32)

    grid = (padded // block_batch,)
    # Constant index_map -> weights/biases DMA'd once, resident in VMEM.
    resident = lambda a: pl.BlockSpec(a.shape, lambda i: (0, 0))

    flops = 2 * padded * (feat * hidden1 + hidden1 * hidden2 + hidden2 * out_dim)
    bytes_accessed = (xt.size * 2 + w1_bf.size * 2 + w2_bf.size * 2
                      + w3_bf.size * 2
                      + (b1c.size + b2c.size + b3c.size) * 4
                      + padded * out_dim * 4)

    out = pl.pallas_call(
        mlp_kernel,
        out_shape=jax.ShapeDtypeStruct((out_dim, padded), jnp.float32),
        grid=grid,
        in_specs=[pl.BlockSpec((feat, block_batch), lambda i: (0, i)),
                  resident(w1_bf), resident(b1c),
                  resident(w2_bf), resident(b2c),
                  resident(w3_bf), resident(b3c)],
        out_specs=pl.BlockSpec((out_dim, block_batch), lambda i: (0, i)),
        compiler_params=pltpu.CompilerParams(
            dimension_semantics=("parallel",)),
        cost_estimate=pl.CostEstimate(
            flops=flops, transcendentals=padded,
            bytes_accessed=bytes_accessed),
    )(xt, w1_bf, b1c, w2_bf, b2c, w3_bf, b3c)

    # Padded columns (zero-filled x) flow through the net and are sliced off.
    return jnp.reshape(out[0, :batch], (batch, 1))


def init_linear(key, fan_in, fan_out):
    # Mirrors PyTorch nn.Linear default init (weight in (out, in) layout).
    kw, kb = jax.random.split(key)
    bound = 1.0 / jnp.sqrt(fan_in)
    w = jax.random.uniform(kw, (fan_out, fan_in), jnp.float32, -bound, bound)
    b = jax.random.uniform(kb, (fan_out,), jnp.float32, -bound, bound)
    return w, b


if __name__ == "__main__":
    key = jax.random.PRNGKey(0)
    k_x, k1, k2, k3 = jax.random.split(key, 4)

    batch, features = 256, 32  # features.shape[1] chosen as 32 (synthetic)
    x = jax.random.normal(k_x, (batch, features), jnp.float32)

    w1, b1 = init_linear(k1, features, 128)
    w2, b2 = init_linear(k2, 128, 64)
    w3, b3 = init_linear(k3, 64, 1)

    # block_batch=128 -> grid=(2,) so the batch-streaming pipeline (and v7x
    # two-core split) is exercised even at this small demo size.
    out = mlp_forward(x, w1, b1, w2, b2, w3, b3, block_batch=128)
    out = jax.block_until_ready(out)

    # Pure-JAX f32 reference (PyTorch layout: y = x @ W^T + b).
    ref = jnp.maximum(x @ w1.T + b1, 0.0)
    ref = jnp.maximum(ref @ w2.T + b2, 0.0)
    ref = jax.nn.sigmoid(ref @ w3.T + b3)

    assert out.shape == (batch, 1)
    # bf16 MXU inputs (x, W1, W2, w3) -> small numeric delta vs f32 reference.
    assert jnp.allclose(out, ref, atol=2e-2), "mismatch vs reference"

    print("KERNEL_OK")
</pallas_src>

<mosaic_0001>
module attributes {stable_mosaic.version = 11 : i64} {
  func.func @mlp_kernel(%arg0: i32, %arg1: memref<32x128xbf16, #tpu.memory_space<vmem>>, %arg2: memref<128x32xbf16, #tpu.memory_space<vmem>>, %arg3: memref<128x1xf32, #tpu.memory_space<vmem>>, %arg4: memref<64x128xbf16, #tpu.memory_space<vmem>>, %arg5: memref<64x1xf32, #tpu.memory_space<vmem>>, %arg6: memref<1x64xbf16, #tpu.memory_space<vmem>>, %arg7: memref<1x1xf32, #tpu.memory_space<vmem>>, %arg8: memref<1x128xf32, #tpu.memory_space<vmem>>) attributes {dimension_semantics = [#tpu.dimension_semantics<parallel>], iteration_bounds = array<i64: 2>, scalar_prefetch = 0 : i64, scratch_operands = 0 : i64, tpu.core_type = #tpu.core_type<tc>, window_params = [{transform_indices = @transform_0, window_bounds = array<i64: 32, 128>}, {pipeline_mode = #tpu.pipeline_mode<synchronous>, transform_indices = @transform_1, window_bounds = array<i64: 128, 32>}, {pipeline_mode = #tpu.pipeline_mode<synchronous>, transform_indices = @transform_2, window_bounds = array<i64: 128, 1>}, {pipeline_mode = #tpu.pipeline_mode<synchronous>, transform_indices = @transform_3, window_bounds = array<i64: 64, 128>}, {pipeline_mode = #tpu.pipeline_mode<synchronous>, transform_indices = @transform_4, window_bounds = array<i64: 64, 1>}, {pipeline_mode = #tpu.pipeline_mode<synchronous>, transform_indices = @transform_5, window_bounds = array<i64: 1, 64>}, {pipeline_mode = #tpu.pipeline_mode<synchronous>, transform_indices = @transform_6, window_bounds = array<i64: 1, 1>}, {transform_indices = @transform_7, window_bounds = array<i64: 1, 128>}]} {
    %c0 = arith.constant 0 : index
    %c0_0 = arith.constant 0 : index
    %0 = vector.load %arg2[%c0, %c0_0] : memref<128x32xbf16, #tpu.memory_space<vmem>>, vector<128x32xbf16>
    %c0_1 = arith.constant 0 : index
    %c0_2 = arith.constant 0 : index
    %1 = vector.load %arg1[%c0_1, %c0_2] : memref<32x128xbf16, #tpu.memory_space<vmem>>, vector<32x128xbf16>
    %cst = arith.constant dense<0.000000e+00> : vector<128x128xf32>
    %2 = tpu.matmul %0, %1, %cst {dimension_numbers = #tpu.dot_dimension_numbers<[1], [0], [0], [1], [0, 0, 1, 1], [], []>} : vector<128x32xbf16>, vector<32x128xbf16>, vector<128x128xf32> -> vector<128x128xf32>
    %c0_3 = arith.constant 0 : index
    %c0_4 = arith.constant 0 : index
    %3 = vector.load %arg3[%c0_3, %c0_4] : memref<128x1xf32, #tpu.memory_space<vmem>>, vector<128x1xf32>
    %4 = vector.broadcast %3 : vector<128x1xf32> to vector<128x128xf32>
    %5 = arith.addf %2, %4 : vector<128x128xf32>
    %cst_5 = arith.constant 0.000000e+00 : f32
    %6 = vector.broadcast %cst_5 : f32 to vector<128x128xf32>
    %7 = arith.maximumf %5, %6 : vector<128x128xf32>
    %c0_6 = arith.constant 0 : index
    %c0_7 = arith.constant 0 : index
    %8 = vector.load %arg4[%c0_6, %c0_7] : memref<64x128xbf16, #tpu.memory_space<vmem>>, vector<64x128xbf16>
    %9 = arith.truncf %7 : vector<128x128xf32> to vector<128x128xbf16>
    %cst_8 = arith.constant dense<0.000000e+00> : vector<64x128xf32>
    %10 = tpu.matmul %8, %9, %cst_8 {dimension_numbers = #tpu.dot_dimension_numbers<[1], [0], [0], [1], [0, 0, 1, 1], [], []>} : vector<64x128xbf16>, vector<128x128xbf16>, vector<64x128xf32> -> vector<64x128xf32>
    %c0_9 = arith.constant 0 : index
    %c0_10 = arith.constant 0 : index
    %11 = vector.load %arg5[%c0_9, %c0_10] : memref<64x1xf32, #tpu.memory_space<vmem>>, vector<64x1xf32>
    %12 = vector.broadcast %11 : vector<64x1xf32> to vector<64x128xf32>
    %13 = arith.addf %10, %12 : vector<64x128xf32>
    %cst_11 = arith.constant 0.000000e+00 : f32
    %14 = vector.broadcast %cst_11 : f32 to vector<64x128xf32>
    %15 = arith.maximumf %13, %14 : vector<64x128xf32>
    %c0_12 = arith.constant 0 : index
    %c0_13 = arith.constant 0 : index
    %16 = vector.load %arg6[%c0_12, %c0_13] : memref<1x64xbf16, #tpu.memory_space<vmem>>, vector<1x64xbf16>
    %17 = arith.truncf %15 : vector<64x128xf32> to vector<64x128xbf16>
    %cst_14 = arith.constant dense<0.000000e+00> : vector<1x128xf32>
    %18 = tpu.matmul %16, %17, %cst_14 {dimension_numbers = #tpu.dot_dimension_numbers<[1], [0], [0], [1], [0, 0, 1, 1], [], []>} : vector<1x64xbf16>, vector<64x128xbf16>, vector<1x128xf32> -> vector<1x128xf32>
    %c0_15 = arith.constant 0 : index
    %c0_16 = arith.constant 0 : index
    %19 = vector.load %arg7[%c0_15, %c0_16] : memref<1x1xf32, #tpu.memory_space<vmem>>, vector<1x1xf32>
    %20 = vector.broadcast %19 : vector<1x1xf32> to vector<1x128xf32>
    %21 = arith.addf %18, %20 : vector<1x128xf32>
    %cst_17 = arith.constant 0.000000e+00 : f32
    %22 = vector.broadcast %cst_17 : f32 to vector<1x128xf32>
    %23 = arith.subf %22, %21 : vector<1x128xf32>
    %24 = math.exp %23 : vector<1x128xf32>
    %cst_18 = arith.constant 1.000000e+00 : f32
    %25 = vector.broadcast %cst_18 : f32 to vector<1x128xf32>
    %26 = arith.addf %25, %24 : vector<1x128xf32>
    %cst_19 = arith.constant 1.000000e+00 : f32
    %27 = vector.broadcast %cst_19 : f32 to vector<1x128xf32>
    %28 = arith.divf %27, %26 : vector<1x128xf32>
    %c0_20 = arith.constant 0 : index
    %c0_21 = arith.constant 0 : index
    %29 = vector.load %arg8[%c0_20, %c0_21] : memref<1x128xf32, #tpu.memory_space<vmem>>, vector<1x128xf32>
    tpu.vector_store %arg8[%c0_20, %c0_21], %28 {strides = array<i32>} : memref<1x128xf32, #tpu.memory_space<vmem>>, vector<1x128xf32>,
    return
  }
  func.func @transform_0(%arg0: i32) -> (i32, i32) {
    %c0_i32 = arith.constant 0 : i32
    %c0_i32_0 = arith.constant 0 : i32
    return %c0_i32, %arg0 : i32, i32
  }
  func.func @transform_1(%arg0: i32) -> (i32, i32) {
    %c0_i32 = arith.constant 0 : i32
    %c0_i32_0 = arith.constant 0 : i32
    %c0_i32_1 = arith.constant 0 : i32
    return %c0_i32, %c0_i32_0 : i32, i32
  }
  func.func @transform_2(%arg0: i32) -> (i32, i32) {
    %c0_i32 = arith.constant 0 : i32
    %c0_i32_0 = arith.constant 0 : i32
    %c0_i32_1 = arith.constant 0 : i32
    return %c0_i32, %c0_i32_0 : i32, i32
  }
  func.func @transform_3(%arg0: i32) -> (i32, i32) {
    %c0_i32 = arith.constant 0 : i32
    %c0_i32_0 = arith.constant 0 : i32
    %c0_i32_1 = arith.constant 0 : i32
    return %c0_i32, %c0_i32_0 : i32, i32
  }
  func.func @transform_4(%arg0: i32) -> (i32, i32) {
    %c0_i32 = arith.constant 0 : i32
    %c0_i32_0 = arith.constant 0 : i32
    %c0_i32_1 = arith.constant 0 : i32
    return %c0_i32, %c0_i32_0 : i32, i32
  }
  func.func @transform_5(%arg0: i32) -> (i32, i32) {
    %c0_i32 = arith.constant 0 : i32
    %c0_i32_0 = arith.constant 0 : i32
    %c0_i32_1 = arith.constant 0 : i32
    return %c0_i32, %c0_i32_0 : i32, i32
  }
  func.func @transform_6(%arg0: i32) -> (i32, i32) {
    %c0_i32 = arith.constant 0 : i32
    %c0_i32_0 = arith.constant 0 : i32
    %c0_i32_1 = arith.constant 0 : i32
    return %c0_i32, %c0_i32_0 : i32, i32
  }
  func.func @transform_7(%arg0: i32) -> (i32, i32) {
    %c0_i32 = arith.constant 0 : i32
    %c0_i32_0 = arith.constant 0 : i32
    return %c0_i32, %arg0 : i32, i32
  }
}

</mosaic_0001>

<llo_original>
// kernel: tpu_custom_call.1
$region0: #{tpu_custom_call.1}
  #allocation0 [shape = 'u32[]', space=smem, size = 0x4, offset = 0x4, fixed_abs, tag = 'smem constant byte address 0x4 - core index']
  #allocation1 [shape = 'u32[144,128]{1,0:T(1,128)}', space=vmem, size = 0x12000, scoped, tag = 'internal scratch']
  #allocation2 [shape = 'f32[1,1]{1,0:T(1,128)S(1)}', space=vmem, size = 0x200, scoped, tag = 'scoped memory for tpu_custom_call.1']
  %s0 = inlined_call_operand.vmem [shape: bf16[32,256], index: 0, kind: input, shape index: {}]
  %s1 = inlined_call_operand.vmem [shape: bf16[128,32], index: 1, kind: input, shape index: {}]
  %s2 = inlined_call_operand.vmem [shape: f32[128,1], index: 2, kind: input, shape index: {}]
  %s3 = inlined_call_operand.vmem [shape: bf16[64,128], index: 3, kind: input, shape index: {}]
  %s4 = inlined_call_operand.vmem [shape: f32[64,1], index: 4, kind: input, shape index: {}]
  %s5 = inlined_call_operand.vmem [shape: bf16[1,64], index: 5, kind: input, shape index: {}]
  %s6 = inlined_call_operand.<no memory space> [shape: f32[1,1], index: 6, kind: input, shape index: {}]
  %s7 = inlined_call_operand.hbm [shape: f32[1,256], index: 7, kind: output, shape index: {}]
  %s8 = sld [smem:[#allocation0]]
  $region102: #{tpu_custom_call.1} parent=0
    _
  %s10 = ssub.s32 1, %s8
  %s11 = scalar_select 0, %s10, %s8
  %v12 = vstv %s6
  %13 = vst [vmem:[#allocation2] sm:$0x1] %v12
  $region1: #{tpu_custom_call.1} parent=0
    #allocation3 [shape = 'u8[16384]{0}', space=vmem, size = 0x4000, scoped, tag = 'input window, operand 0']
    #allocation4 [shape = 'u8[1024]{0}', space=vmem, size = 0x400, scoped, tag = 'output window, operand 0']
    #allocation5 [shape = 's32[2]{0}', space=sflag, size = 0x8, scoped, tag = 'scoped memory for tpu_custom_call.1']
    %14 = vsyncpa [#allocation5], 0
    %s15 = scalar_lea.sflag [#allocation5], 1
    %16 = vsyncpa %s15, 0
    loop: start=0, step=1, limit=4
    $region2: #{tpu_custom_call.1} parent=1 // loop_pre_header
      _
    $region3: #{tpu_custom_call.1} parent=1 // loop_header
      %s18 = sphi 0, %s22
      %p19 = scmp.ge.s32.totalorder %s18, 4
      %s28 = sphi 0, %s30
      %s31 = sphi 0, %s28
      %s32 = sphi 0, %s31
      %s48 = sphi 0, %s32
      %s52 = sphi 0, %s52
      %s54 = sphi 0, %s52
      %s55 = sphi 0, %s54
      %s69 = sphi 0, %s55
      %s73 = sphi 0, %s73
      %s75 = sphi 0, %s73
      %s76 = sphi 0, %s75
      %s90 = sphi 0, %s76
      %s94 = sphi 0, %s94
      %s96 = sphi 0, %s94
      %s97 = sphi 0, %s96
      %s111 = sphi 0, %s97
      %s115 = sphi 0, %s115
      %s117 = sphi 0, %s115
      %s118 = sphi 0, %s117
      %s132 = sphi 0, %s118
      %s136 = sphi 0, %s136
      %s138 = sphi 0, %s136
      %s139 = sphi 0, %s138
      %s153 = sphi 0, %s139
      %s157 = sphi 0, %s157
      %s159 = sphi 0, %s157
      %s160 = sphi 0, %s159
      %s174 = sphi 0, %s160
      %s180 = sphi 0, %s182
      %s183 = sphi 0, %s180
      %s184 = sphi 0, %s183
      %s200 = sphi 0, %s184
    $region4: #{tpu_custom_call.1} parent=1 // loop_header_branch
      %21 = sbr.rel (%p19) target = $region8
    $region5: #{tpu_custom_call.1} parent=1 // loop_body
      %s23 = ssub.s32 %s18, 1
      %s24 = ssub.s32 %s18, 2
      %s25 = sadd.s32 %s18, 1
      %s26 = ssub.s32 %s18, %s25
      %p27 = scmp.eq.s32.totalorder %s26, 0
      %s29 = sadd.s32 %s28, 1
      %s30 = scalar_select %p27, %s28, %s29
      %p33 = pneg %p27
      %p34 = scmp.eq.s32.totalorder %s18, 1
      %p35 = por %p33, %p34
      %p36 = scmp.ne.s32.totalorder %s28, %s31
      %p37 = scmp.eq.s32.totalorder %s18, 0
      %p38 = por %p36, %p37
      %p39 = scmp.ne.s32.totalorder %s28, %s31
      %p40 = scmp.eq.s32.totalorder %s23, 1
      %p41 = por %p39, %p40
      %p42 = scmp.ne.s32.totalorder %s31, %s32
      %p43 = scmp.eq.s32.totalorder %s23, 0
      %p44 = por %p42, %p43
      %p45 = scmp.ne.s32.totalorder %s31, %s32
      %p46 = scmp.eq.s32.totalorder %s24, 1
      %p47 = por %p45, %p46
      %p49 = scmp.ne.s32.totalorder %s32, %s48
      %p50 = scmp.eq.s32.totalorder %s24, 0
      %p51 = por %p49, %p50
      %s53 = sadd.s32 %s52, 1
      %p56 = scmp.eq.s32.totalorder %s18, 1
      %p57 = scmp.ne.s32.totalorder %s52, %s54
      %p58 = scmp.eq.s32.totalorder %s18, 0
      %p59 = por %p57, %p58
      %p60 = scmp.ne.s32.totalorder %s52, %s54
      %p61 = scmp.eq.s32.totalorder %s23, 1
      %p62 = por %p60, %p61
      %p63 = scmp.ne.s32.totalorder %s54, %s55
      %p64 = scmp.eq.s32.totalorder %s23, 0
      %p65 = por %p63, %p64
      %p66 = scmp.ne.s32.totalorder %s54, %s55
      %p67 = scmp.eq.s32.totalorder %s24, 1
      %p68 = por %p66, %p67
      %p70 = scmp.ne.s32.totalorder %s55, %s69
      %p71 = scmp.eq.s32.totalorder %s24, 0
      %p72 = por %p70, %p71
      %s74 = sadd.s32 %s73, 1
      %p77 = scmp.eq.s32.totalorder %s18, 1
      %p78 = scmp.ne.s32.totalorder %s73, %s75
      %p79 = scmp.eq.s32.totalorder %s18, 0
      %p80 = por %p78, %p79
      %p81 = scmp.ne.s32.totalorder %s73, %s75
      %p82 = scmp.eq.s32.totalorder %s23, 1
      %p83 = por %p81, %p82
      %p84 = scmp.ne.s32.totalorder %s75, %s76
      %p85 = scmp.eq.s32.totalorder %s23, 0
      %p86 = por %p84, %p85
      %p87 = scmp.ne.s32.totalorder %s75, %s76
      %p88 = scmp.eq.s32.totalorder %s24, 1
      %p89 = por %p87, %p88
      %p91 = scmp.ne.s32.totalorder %s76, %s90
      %p92 = scmp.eq.s32.totalorder %s24, 0
      %p93 = por %p91, %p92
      %s95 = sadd.s32 %s94, 1
      %p98 = scmp.eq.s32.totalorder %s18, 1
      %p99 = scmp.ne.s32.totalorder %s94, %s96
      %p100 = scmp.eq.s32.totalorder %s18, 0
      %p101 = por %p99, %p100
      %p102 = scmp.ne.s32.totalorder %s94, %s96
      %p103 = scmp.eq.s32.totalorder %s23, 1
      %p104 = por %p102, %p103
      %p105 = scmp.ne.s32.totalorder %s96, %s97
      %p106 = scmp.eq.s32.totalorder %s23, 0
      %p107 = por %p105, %p106
      %p108 = scmp.ne.s32.totalorder %s96, %s97
      %p109 = scmp.eq.s32.totalorder %s24, 1
      %p110 = por %p108, %p109
      %p112 = scmp.ne.s32.totalorder %s97, %s111
      %p113 = scmp.eq.s32.totalorder %s24, 0
      %p114 = por %p112, %p113
      %s116 = sadd.s32 %s115, 1
      %p119 = scmp.eq.s32.totalorder %s18, 1
      %p120 = scmp.ne.s32.totalorder %s115, %s117
      %p121 = scmp.eq.s32.totalorder %s18, 0
      %p122 = por %p120, %p121
      %p123 = scmp.ne.s32.totalorder %s115, %s117
      %p124 = scmp.eq.s32.totalorder %s23, 1
      %p125 = por %p123, %p124
      %p126 = scmp.ne.s32.totalorder %s117, %s118
      %p127 = scmp.eq.s32.totalorder %s23, 0
      %p128 = por %p126, %p127
      %p129 = scmp.ne.s32.totalorder %s117, %s118
      %p130 = scmp.eq.s32.totalorder %s24, 1
      %p131 = por %p129, %p130
      %p133 = scmp.ne.s32.totalorder %s118, %s132
      %p134 = scmp.eq.s32.totalorder %s24, 0
      %p135 = por %p133, %p134
      %s137 = sadd.s32 %s136, 1
      %p140 = scmp.eq.s32.totalorder %s18, 1
      %p141 = scmp.ne.s32.totalorder %s136, %s138
      %p142 = scmp.eq.s32.totalorder %s18, 0
      %p143 = por %p141, %p142
      %p144 = scmp.ne.s32.totalorder %s136, %s138
      %p145 = scmp.eq.s32.totalorder %s23, 1
      %p146 = por %p144, %p145
      %p147 = scmp.ne.s32.totalorder %s138, %s139
      %p148 = scmp.eq.s32.totalorder %s23, 0
      %p149 = por %p147, %p148
      %p150 = scmp.ne.s32.totalorder %s138, %s139
      %p151 = scmp.eq.s32.totalorder %s24, 1
      %p152 = por %p150, %p151
      %p154 = scmp.ne.s32.totalorder %s139, %s153
      %p155 = scmp.eq.s32.totalorder %s24, 0
      %p156 = por %p154, %p155
      %s158 = sadd.s32 %s157, 1
      %p161 = scmp.eq.s32.totalorder %s18, 1
      %p162 = scmp.ne.s32.totalorder %s157, %s159
      %p163 = scmp.eq.s32.totalorder %s18, 0
      %p164 = por %p162, %p163
      %p165 = scmp.ne.s32.totalorder %s157, %s159
      %p166 = scmp.eq.s32.totalorder %s23, 1
      %p167 = por %p165, %p166
      %p168 = scmp.ne.s32.totalorder %s159, %s160
      %p169 = scmp.eq.s32.totalorder %s23, 0
      %p170 = por %p168, %p169
      %p171 = scmp.ne.s32.totalorder %s159, %s160
      %p172 = scmp.eq.s32.totalorder %s24, 1
      %p173 = por %p171, %p172
      %p175 = scmp.ne.s32.totalorder %s160, %s174
      %p176 = scmp.eq.s32.totalorder %s24, 0
      %p177 = por %p175, %p176
      %s178 = ssub.s32 %s18, %s25
      %p179 = scmp.eq.s32.totalorder %s178, 0
      %s181 = sadd.s32 %s180, 1
      %s182 = scalar_select %p179, %s180, %s181
      %p185 = pneg %p179
      %p186 = scmp.eq.s32.totalorder %s18, 1
      %p187 = por %p185, %p186
      %p188 = scmp.ne.s32.totalorder %s180, %s183
      %p189 = scmp.eq.s32.totalorder %s18, 0
      %p190 = por %p188, %p189
      %p191 = scmp.ne.s32.totalorder %s180, %s183
      %p192 = scmp.eq.s32.totalorder %s23, 1
      %p193 = por %p191, %p192
      %p194 = scmp.ne.s32.totalorder %s183, %s184
      %p195 = scmp.eq.s32.totalorder %s23, 0
      %p196 = por %p194, %p195
      %p197 = scmp.ne.s32.totalorder %s183, %s184
      %p198 = scmp.eq.s32.totalorder %s24, 1
      %p199 = por %p197, %p198
      %p201 = scmp.ne.s32.totalorder %s184, %s200
      %p202 = scmp.eq.s32.totalorder %s24, 0
      %p203 = por %p201, %p202
      %p204 = scmp.le.s32.totalorder 1, %s18
      %p205 = scmp.lt.s32.totalorder %s18, 3
      %p206 = pnand %p204, %p205
      %p207 = pneg %p206
      // Predicated region
      $region9: #{tpu_custom_call.1} parent=5 // pred_check
        _
      $region10: #{tpu_custom_call.1} parent=5 // pred_check_branch
        %209 = sbr.rel (%p206) target = $region12
      $region11: #{tpu_custom_call.1} parent=5 // pred_region
        %s210 = ssub.s32 %s18, 1
        // Predicated region
        $region13: #{tpu_custom_call.1} parent=11 // pred_check
          %p211 = pneg %p65
        $region14: #{tpu_custom_call.1} parent=11 // pred_check_branch
          %213 = sbr.rel (%p211) target = $region16
        $region15: #{tpu_custom_call.1} parent=11 // pred_region
          _
        $region16: #{tpu_custom_call.1} parent=11 // pred_fallthru
          _
        // Predicated region
        $region17: #{tpu_custom_call.1} parent=11 // pred_check
          %p214 = pneg %p86
        $region18: #{tpu_custom_call.1} parent=11 // pred_check_branch
          %216 = sbr.rel (%p214) target = $region20
        $region19: #{tpu_custom_call.1} parent=11 // pred_region
          _
        $region20: #{tpu_custom_call.1} parent=11 // pred_fallthru
          _
        // Predicated region
        $region21: #{tpu_custom_call.1} parent=11 // pred_check
          %p217 = pneg %p107
        $region22: #{tpu_custom_call.1} parent=11 // pred_check_branch
          %219 = sbr.rel (%p217) target = $region24
        $region23: #{tpu_custom_call.1} parent=11 // pred_region
          _
        $region24: #{tpu_custom_call.1} parent=11 // pred_fallthru
          _
        // Predicated region
        $region25: #{tpu_custom_call.1} parent=11 // pred_check
          %p220 = pneg %p128
        $region26: #{tpu_custom_call.1} parent=11 // pred_check_branch
          %222 = sbr.rel (%p220) target = $region28
        $region27: #{tpu_custom_call.1} parent=11 // pred_region
          _
        $region28: #{tpu_custom_call.1} parent=11 // pred_fallthru
          _
        // Predicated region
        $region29: #{tpu_custom_call.1} parent=11 // pred_check
          %p223 = pneg %p149
        $region30: #{tpu_custom_call.1} parent=11 // pred_check_branch
          %225 = sbr.rel (%p223) target = $region32
        $region31: #{tpu_custom_call.1} parent=11 // pred_region
          _
        $region32: #{tpu_custom_call.1} parent=11 // pred_fallthru
          _
        // Predicated region
        $region33: #{tpu_custom_call.1} parent=11 // pred_check
          %p226 = pneg %p170
        $region34: #{tpu_custom_call.1} parent=11 // pred_check_branch
          %228 = sbr.rel (%p226) target = $region36
        $region35: #{tpu_custom_call.1} parent=11 // pred_region
          _
        $region36: #{tpu_custom_call.1} parent=11 // pred_fallthru
          _
      $region12: #{tpu_custom_call.1} parent=5 // pred_fallthru
        _
      %p229 = scmp.lt.s32.totalorder %s18, 2
      // Predicated region
      $region37: #{tpu_custom_call.1} parent=5 // pred_check
        %p230 = pneg %p229
      $region38: #{tpu_custom_call.1} parent=5 // pred_check_branch
        %232 = sbr.rel (%p230) target = $region40
      $region39: #{tpu_custom_call.1} parent=5 // pred_region
        // Predicated region
        $region41: #{tpu_custom_call.1} parent=39 // pred_check
          %p233 = pneg %p38
        $region42: #{tpu_custom_call.1} parent=39 // pred_check_branch
          %235 = sbr.rel (%p233) target = $region44
        $region43: #{tpu_custom_call.1} parent=39 // pred_region
          %s236 = sand.u32 %s28, 1
          %s237 = sand.u32 %s28, 1
          %s238 = smul.addr %s237, 16
          %s239 = scalar_lea.vmem [#allocation3], %s238
          %s240 = smul.addr %s18, 4
          %s241 = scalar_lea.vmem %s0, %s240
          // Predicated region
          $region45: #{tpu_custom_call.1} parent=43 // pred_check
            _
          $region46: #{tpu_custom_call.1} parent=43 // pred_check_branch
            %243 = sbr.rel (0) target = $region48
          $region47: #{tpu_custom_call.1} parent=43 // pred_region
            // Predicated region
            $region49: #{tpu_custom_call.1} parent=47 // pred_check
              _
            $region50: #{tpu_custom_call.1} parent=47 // pred_check_branch
              %245 = sbr.rel target = $region52
            $region51: #{tpu_custom_call.1} parent=47 // pred_region
              // Predicated region
              $region64: #{tpu_custom_call.1} parent=51 // pred_check
                _
              $region65: #{tpu_custom_call.1} parent=51 // pred_check_branch
                %267 = sbr.rel (0) target = $region67
              $region66: #{tpu_custom_call.1} parent=51 // pred_region
                loop: start=0, step=1, limit=1
                $region68: #{tpu_custom_call.1} parent=66 // loop_pre_header
                  _
                $region69: #{tpu_custom_call.1} parent=66 // loop_header
                  %s269 = sphi 0, %s273
                  %p270 = scmp.ge.s32.totalorder %s269, 1
                  %s274 = sphi %s241, %s241
                  %s275 = sphi %s239, %s239
                $region70: #{tpu_custom_call.1} parent=66 // loop_header_branch
                  %272 = sbr.rel (%p270) target = $region74
                $region71: #{tpu_custom_call.1} parent=66 // loop_body
                  _
                $region72: #{tpu_custom_call.1} parent=66 // loop_footer
                  %s273 = sadd.s32 1, %s269
                $region73: #{tpu_custom_call.1} parent=66 // loop_footer_branch
                  %268 = sbr.rel target = $region69
                $region74: #{tpu_custom_call.1} parent=66 // loop_exit
                  _
                %s277 = ssub.s32 16, 1
                loop: start=0, step=1, limit=1
                $region75: #{tpu_custom_call.1} parent=66 // loop_pre_header
                  _
                $region76: #{tpu_custom_call.1} parent=66 // loop_header
                  %s279 = sphi 0, %s283
                  %p280 = scmp.ge.s32.totalorder %s279, 1
                  %s284 = sphi %s241, %s241
                  %s285 = sphi %s239, %s239
                $region77: #{tpu_custom_call.1} parent=66 // loop_header_branch
                  %282 = sbr.rel (%p280) target = $region81
                $region78: #{tpu_custom_call.1} parent=66 // loop_body
                  %v286 = vld [vmem:[%s284] sm:%s277]
                  %287 = vst [vmem:[%s285] sm:%s277] %v286
                  %v288 = vld [vmem:[%s284 + $0x8] sm:%s277]
                  %289 = vst [vmem:[%s285 + $0x4] sm:%s277] %v288
                  %v290 = vld [vmem:[%s284 + $0x10] sm:%s277]
                  %291 = vst [vmem:[%s285 + $0x8] sm:%s277] %v290
                  %v292 = vld [vmem:[%s284 + $0x18] sm:%s277]
                  %293 = vst [vmem:[%s285 + $0xc] sm:%s277] %v292
                $region79: #{tpu_custom_call.1} parent=66 // loop_footer
                  %s283 = sadd.s32 1, %s279
                $region80: #{tpu_custom_call.1} parent=66 // loop_footer_branch
                  %278 = sbr.rel target = $region76
                $region81: #{tpu_custom_call.1} parent=66 // loop_exit
                  _
              $region67: #{tpu_custom_call.1} parent=51 // pred_fallthru
                _
            $region52: #{tpu_custom_call.1} parent=47 // pred_fallthru
              _
            // Predicated region
            $region53: #{tpu_custom_call.1} parent=47 // pred_check
              _
            $region54: #{tpu_custom_call.1} parent=47 // pred_check_branch
              %247 = sbr.rel (0) target = $region56
            $region55: #{tpu_custom_call.1} parent=47 // pred_region
              %s249 = ssub.s32 16, 1
              loop: start=0, step=1, limit=1
              $region57: #{tpu_custom_call.1} parent=55 // loop_pre_header
                _
              $region58: #{tpu_custom_call.1} parent=55 // loop_header
                %s251 = sphi 0, %s255
                %p252 = scmp.ge.s32.totalorder %s251, 1
                %s256 = sphi %s241, %s241
                %s257 = sphi %s239, %s239
              $region59: #{tpu_custom_call.1} parent=55 // loop_header_branch
                %254 = sbr.rel (%p252) target = $region63
              $region60: #{tpu_custom_call.1} parent=55 // loop_body
                %v258 = vld [vmem:[%s256] sm:%s249]
                %259 = vst [vmem:[%s257] sm:%s249] %v258
                %v260 = vld [vmem:[%s256 + $0x8] sm:%s249]
                %261 = vst [vmem:[%s257 + $0x4] sm:%s249] %v260
                %v262 = vld [vmem:[%s256 + $0x10] sm:%s249]
                %263 = vst [vmem:[%s257 + $0x8] sm:%s249] %v262
                %v264 = vld [vmem:[%s256 + $0x18] sm:%s249]
                %265 = vst [vmem:[%s257 + $0xc] sm:%s249] %v264
              $region61: #{tpu_custom_call.1} parent=55 // loop_footer
                %s255 = sadd.s32 1, %s251
              $region62: #{tpu_custom_call.1} parent=55 // loop_footer_branch
                %250 = sbr.rel target = $region58
              $region63: #{tpu_custom_call.1} parent=55 // loop_exit
                _
            $region56: #{tpu_custom_call.1} parent=47 // pred_fallthru
              _
          $region48: #{tpu_custom_call.1} parent=43 // pred_fallthru
            _
          %294 = vnop
        $region44: #{tpu_custom_call.1} parent=39 // pred_fallthru
          _
      $region40: #{tpu_custom_call.1} parent=5 // pred_fallthru
        _
      %p295 = scmp.le.s32.totalorder 1, %s18
      %p296 = scmp.lt.s32.totalorder %s18, 3
      %p297 = pnand %p295, %p296
      %p298 = pneg %p297
      // Predicated region
      $region82: #{tpu_custom_call.1} parent=5 // pred_check
        _
      $region83: #{tpu_custom_call.1} parent=5 // pred_check_branch
        %300 = sbr.rel (%p297) target = $region85
      $region84: #{tpu_custom_call.1} parent=5 // pred_region
        %s301 = ssub.s32 %s18, 1
        %s302 = sand.u32 %s31, 1
        %s303 = sand.u32 %s31, 1
        %s304 = smul.addr %s303, 16
        %s305 = scalar_lea.vmem [#allocation3], %s304
        // Predicated region
        $region86: #{tpu_custom_call.1} parent=84 // pred_check
          %p306 = pneg %p44
        $region87: #{tpu_custom_call.1} parent=84 // pred_check_branch
          %308 = sbr.rel (%p306) target = $region89
        $region88: #{tpu_custom_call.1} parent=84 // pred_region
          _
        $region89: #{tpu_custom_call.1} parent=84 // pred_fallthru
          _
        %s309 = sand.u32 %s31, 1
        %s310 = sand.u32 %s31, 1
        %s311 = smul.addr %s310, 16
        %s312 = scalar_lea.vmem [#allocation3], %s311
        %p313 = pneg %p44
        %p314 = pneg %p41
        %p315 = pneg %p65
        %p316 = pneg %p62
        %p317 = pneg %p86
        %p318 = pneg %p83
        %p319 = pneg %p107
        %p320 = pneg %p104
        %p321 = pneg %p128
        %p322 = pneg %p125
        %p323 = pneg %p149
        %p324 = pneg %p146
        %p325 = pneg %p170
        %p326 = pneg %p167
        %p327 = pneg %p196
        %p328 = pneg %p193
        %s329 = sand.u32 %s183, 1
        %s330 = scalar_lea.sflag [#allocation5], %s329
        %s331 = sand.u32 %s183, 1
        %s332 = scalar_lea.vmem [#allocation4], %s331
        %v334 = vld [vmem:[%s1] sm:$0xf]
        %v335 = vld [vmem:[%s1 + $0x4] sm:$0xf]
        %v336 = vld [vmem:[%s1 + $0x8] sm:$0xf]
        %v337 = vld [vmem:[%s1 + $0xc] sm:$0xf]
        %v338 = vld [vmem:[%s1 + $0x10] sm:$0xf]
        %v339 = vld [vmem:[%s1 + $0x14] sm:$0xf]
        %v340 = vld [vmem:[%s1 + $0x18] sm:$0xf]
        %v341 = vld [vmem:[%s1 + $0x1c] sm:$0xf]
        %v342 = vld [vmem:[%s1 + $0x20] sm:$0xf]
        %v343 = vld [vmem:[%s1 + $0x24] sm:$0xf]
        %v344 = vld [vmem:[%s1 + $0x28] sm:$0xf]
        %v345 = vld [vmem:[%s1 + $0x2c] sm:$0xf]
        %v346 = vld [vmem:[%s1 + $0x30] sm:$0xf]
        %v347 = vld [vmem:[%s1 + $0x34] sm:$0xf]
        %v348 = vld [vmem:[%s1 + $0x38] sm:$0xf]
        %v349 = vld [vmem:[%s1 + $0x3c] sm:$0xf]
        %v350 = vld [vmem:[%s305] sm:$0xf]
        %v351 = vld [vmem:[%s305 + $0x4] sm:$0xf]
        %v352 = vld [vmem:[%s305 + $0x8] sm:$0xf]
        %v353 = vld [vmem:[%s305 + $0xc] sm:$0xf]
        %v354 = vld [vmem:[%s2] sm:$0xff]
        %v355 = vld [vmem:[%s2 + $0x8] sm:$0xff]
        %v356 = vld [vmem:[%s2 + $0x10] sm:$0xff]
        %v357 = vld [vmem:[%s2 + $0x18] sm:$0xff]
        %v358 = vld [vmem:[%s2 + $0x20] sm:$0xff]
        %v359 = vld [vmem:[%s2 + $0x28] sm:$0xff]
        %v360 = vld [vmem:[%s2 + $0x30] sm:$0xff]
        %v361 = vld [vmem:[%s2 + $0x38] sm:$0xff]
        %v362 = vld [vmem:[%s2 + $0x40] sm:$0xff]
        %v363 = vld [vmem:[%s2 + $0x48] sm:$0xff]
        %v364 = vld [vmem:[%s2 + $0x50] sm:$0xff]
        %v365 = vld [vmem:[%s2 + $0x58] sm:$0xff]
        %v366 = vld [vmem:[%s2 + $0x60] sm:$0xff]
        %v367 = vld [vmem:[%s2 + $0x68] sm:$0xff]
        %v368 = vld [vmem:[%s2 + $0x70] sm:$0xff]
        %v369 = vld [vmem:[%s2 + $0x78] sm:$0xff]
        %371 = vset.pattern.permute.xlu0 0
        %372 = vperm.xlu0 %371, %v354
        %v373 = vpop.permute.xlu0 %372
        %376 = vset.pattern.permute.xlu0 0
        %377 = vperm.xlu0 %376, %v355
        %v378 = vpop.permute.xlu0 %377
        %381 = vset.pattern.permute.xlu0 0
        %382 = vperm.xlu0 %381, %v356
        %v383 = vpop.permute.xlu0 %382
        %386 = vset.pattern.permute.xlu0 0
        %387 = vperm.xlu0 %386, %v357
        %v388 = vpop.permute.xlu0 %387
        %391 = vset.pattern.permute.xlu0 0
        %392 = vperm.xlu0 %391, %v358
        %v393 = vpop.permute.xlu0 %392
        %396 = vset.pattern.permute.xlu0 0
        %397 = vperm.xlu0 %396, %v359
        %v398 = vpop.permute.xlu0 %397
        %401 = vset.pattern.permute.xlu0 0
        %402 = vperm.xlu0 %401, %v360
        %v403 = vpop.permute.xlu0 %402
        %406 = vset.pattern.permute.xlu0 0
        %407 = vperm.xlu0 %406, %v361
        %v408 = vpop.permute.xlu0 %407
        %411 = vset.pattern.permute.xlu0 0
        %412 = vperm.xlu0 %411, %v362
        %v413 = vpop.permute.xlu0 %412
        %416 = vset.pattern.permute.xlu0 0
        %417 = vperm.xlu0 %416, %v363
        %v418 = vpop.permute.xlu0 %417
        %421 = vset.pattern.permute.xlu0 0
        %422 = vperm.xlu0 %421, %v364
        %v423 = vpop.permute.xlu0 %422
        %426 = vset.pattern.permute.xlu0 0
        %427 = vperm.xlu0 %426, %v365
        %v428 = vpop.permute.xlu0 %427
        %431 = vset.pattern.permute.xlu0 0
        %432 = vperm.xlu0 %431, %v366
        %v433 = vpop.permute.xlu0 %432
        %436 = vset.pattern.permute.xlu0 0
        %437 = vperm.xlu0 %436, %v367
        %v438 = vpop.permute.xlu0 %437
        %441 = vset.pattern.permute.xlu0 0
        %442 = vperm.xlu0 %441, %v368
        %v443 = vpop.permute.xlu0 %442
        %446 = vset.pattern.permute.xlu0 0
        %447 = vperm.xlu0 %446, %v369
        %v448 = vpop.permute.xlu0 %447
        %v466 = vunpack.c.l.b16 %v334
        %v467 = vunpack.c.l.b16 %v335
        %v468 = vunpack.c.l.b16 %v336
        %v469 = vunpack.c.l.b16 %v337
        %v470 = vunpack.c.l.b16 %v338
        %v471 = vunpack.c.l.b16 %v339
        %v472 = vunpack.c.l.b16 %v340
        %v473 = vunpack.c.l.b16 %v341
        %v474 = vunpack.c.l.b16 %v342
        %v475 = vunpack.c.l.b16 %v343
        %v476 = vunpack.c.l.b16 %v344
        %v477 = vunpack.c.l.b16 %v345
        %v478 = vunpack.c.l.b16 %v346
        %v479 = vunpack.c.l.b16 %v347
        %v480 = vunpack.c.l.b16 %v348
        %v481 = vunpack.c.l.b16 %v349
        %v482 = vpack.c.b16 %v467, %v466
        %v483 = vpack.c.b16 %v469, %v468
        %v484 = vpack.c.b16 %v471, %v470
        %v485 = vpack.c.b16 %v473, %v472
        %v486 = vpack.c.b16 %v475, %v474
        %v487 = vpack.c.b16 %v477, %v476
        %v488 = vpack.c.b16 %v479, %v478
        %v489 = vpack.c.b16 %v481, %v480
        %v494 = vunpack.c.l.b16 %v350
        %v495 = vunpack.c.l.b16 %v351
        %v496 = vunpack.c.l.b16 %v352
        %v497 = vunpack.c.l.b16 %v353
        %v498 = vpack.c.b16 %v495, %v494
        %v499 = vpack.c.b16 %v497, %v496
        %vm502 = vcmask 261120
        %v504 = vsel %vm502, %v482, 0
        %v507 = vsel %vm502, %v483, 0
        %v510 = vsel %vm502, %v484, 0
        %v513 = vsel %vm502, %v485, 0
        %v516 = vsel %vm502, %v486, 0
        %v519 = vsel %vm502, %v487, 0
        %v522 = vsel %vm502, %v488, 0
        %v525 = vsel %vm502, %v489, 0
        %527 = vmatprep.subr.bf16.mxu0 0
        %528 = vmatpush1.bf16.msra.mxu0 0
        %529 = vmatprep.subr.bf16.mxu0 0
        %530 = vmatpush1.bf16.msra.mxu0 0
        %531 = vmatprep.subr.bf16.mxu0 0
        %532 = vmatpush1.bf16.msra.mxu0 0
        %533 = vmatprep.subr.bf16.mxu0 0
        %534 = vmatpush1.bf16.msra.mxu0 0
        %535 = vmatprep.subr.bf16.mxu0 0
        %536 = vmatpush1.bf16.msra.mxu0 0
        %537 = vmatprep.subr.bf16.mxu0 0
        %538 = vmatpush1.bf16.msra.mxu0 0
        %539 = vmatprep.subr.bf16.mxu0 0
        %540 = vmatpush1.bf16.msra.mxu0 %v499
        %541 = vmatprep.subr.bf16.mxu0 0
        %542 = vmatpush1.bf16.msra.mxu0 %v498
        %543 = vmatprep.subr.bf16.mxu0 0
        %544 = vmatpush2.bf16.msra.mxu0 0
        %545 = vmatprep.subr.bf16.mxu0 0
        %546 = vmatpush2.bf16.msra.mxu0 0
        %547 = vmatprep.subr.bf16.mxu0 0
        %548 = vmatpush2.bf16.msra.mxu0 0
        %549 = vmatprep.subr.bf16.mxu0 0
        %550 = vmatpush2.bf16.msra.mxu0 0
        %551 = vmatprep.subr.bf16.mxu0 0
        %552 = vmatpush2.bf16.msra.mxu0 0
        %553 = vmatprep.subr.bf16.mxu0 0
        %554 = vmatpush2.bf16.msra.mxu0 0
        %555 = vmatprep.subr.bf16.mxu0 0
        %556 = vmatpush2.bf16.msra.mxu0 0
        %557 = vmatprep.subr.bf16.mxu0 0
        %558 = vmatpush2.bf16.msra.mxu0 0
        %559 = vmatprep.mubr.bf16.mxu0 0
        %560 = vmatmul.mubr.bf16.gmra.mxu0 %v504
        %v561 = vpop.f32.mrf.mxu0
        %v562 = vadd.f32 %v373, %v561
        %v563 = vpop.f32.mrf.mxu0
        %v564 = vpop.f32.mrf.mxu0
        %v565 = vadd.f32 %v378, %v564
        %v566 = vpop.f32.mrf.mxu0
        %567 = vmatprep.mubr.bf16.mxu0 0
        %568 = vmatmul.mubr.bf16.gmra.mxu0 %v507
        %v569 = vpop.f32.mrf.mxu0
        %v570 = vadd.f32 %v383, %v569
        %v571 = vpop.f32.mrf.mxu0
        %v572 = vpop.f32.mrf.mxu0
        %v573 = vadd.f32 %v388, %v572
        %v574 = vpop.f32.mrf.mxu0
        %575 = vmatprep.mubr.bf16.mxu0 0
        %576 = vmatmul.mubr.bf16.gmra.mxu0 %v510
        %v577 = vpop.f32.mrf.mxu0
        %v578 = vadd.f32 %v393, %v577
        %v579 = vpop.f32.mrf.mxu0
        %v580 = vpop.f32.mrf.mxu0
        %v581 = vadd.f32 %v398, %v580
        %v582 = vpop.f32.mrf.mxu0
        %583 = vmatprep.mubr.bf16.mxu0 0
        %584 = vmatmul.mubr.bf16.gmra.mxu0 %v513
        %v585 = vpop.f32.mrf.mxu0
        %v586 = vadd.f32 %v403, %v585
        %v587 = vpop.f32.mrf.mxu0
        %v588 = vpop.f32.mrf.mxu0
        %v589 = vadd.f32 %v408, %v588
        %v590 = vpop.f32.mrf.mxu0
        %591 = vmatprep.mubr.bf16.mxu0 0
        %592 = vmatmul.mubr.bf16.gmra.mxu0 %v516
        %v593 = vpop.f32.mrf.mxu0
        %v594 = vadd.f32 %v413, %v593
        %v595 = vpop.f32.mrf.mxu0
        %v596 = vpop.f32.mrf.mxu0
        %v597 = vadd.f32 %v418, %v596
        %v598 = vpop.f32.mrf.mxu0
        %599 = vmatprep.mubr.bf16.mxu0 0
        %600 = vmatmul.mubr.bf16.gmra.mxu0 %v519
        %v601 = vpop.f32.mrf.mxu0
        %v602 = vadd.f32 %v423, %v601
        %v603 = vpop.f32.mrf.mxu0
        %v604 = vpop.f32.mrf.mxu0
        %v605 = vadd.f32 %v428, %v604
        %v606 = vpop.f32.mrf.mxu0
        %607 = vmatprep.mubr.bf16.mxu0 0
        %608 = vmatmul.mubr.bf16.gmra.mxu0 %v522
        %v609 = vpop.f32.mrf.mxu0
        %v610 = vadd.f32 %v433, %v609
        %v611 = vpop.f32.mrf.mxu0
        %v612 = vpop.f32.mrf.mxu0
        %v613 = vadd.f32 %v438, %v612
        %v614 = vpop.f32.mrf.mxu0
        %615 = vmatprep.mubr.bf16.mxu0 0
        %616 = vmatmul.mubr.bf16.gmra.mxu0 %v525
        %v617 = vpop.f32.mrf.mxu0
        %v618 = vadd.f32 %v443, %v617
        %v619 = vpop.f32.mrf.mxu0
        %v620 = vpop.f32.mrf.mxu0
        %v621 = vadd.f32 %v448, %v620
        %v622 = vpop.f32.mrf.mxu0
        %623 = vdwg.mxu0
        %v624 = vmax.f32 %v562, 0.0
        %v625 = vmax.f32 %v565, 0.0
        %v626 = vmax.f32 %v570, 0.0
        %v627 = vmax.f32 %v573, 0.0
        %v628 = vmax.f32 %v578, 0.0
        %v629 = vmax.f32 %v581, 0.0
        %v630 = vmax.f32 %v586, 0.0
        %v631 = vmax.f32 %v589, 0.0
        %v632 = vmax.f32 %v594, 0.0
        %v633 = vmax.f32 %v597, 0.0
        %v634 = vmax.f32 %v602, 0.0
        %v635 = vmax.f32 %v605, 0.0
        %v636 = vmax.f32 %v610, 0.0
        %v637 = vmax.f32 %v613, 0.0
        %v638 = vmax.f32 %v618, 0.0
        %v639 = vmax.f32 %v621, 0.0
        %v640 = vld [vmem:[%s3] sm:$0xf]
        %v641 = vld [vmem:[%s3 + $0x4] sm:$0xf]
        %v642 = vld [vmem:[%s3 + $0x8] sm:$0xf]
        %v643 = vld [vmem:[%s3 + $0xc] sm:$0xf]
        %v644 = vld [vmem:[%s3 + $0x10] sm:$0xf]
        %v645 = vld [vmem:[%s3 + $0x14] sm:$0xf]
        %v646 = vld [vmem:[%s3 + $0x18] sm:$0xf]
        %v647 = vld [vmem:[%s3 + $0x1c] sm:$0xf]
        %v648 = vpack.c.bf16 %v625, %v624
        %v649 = vpack.c.bf16 %v627, %v626
        %v650 = vpack.c.bf16 %v629, %v628
        %v651 = vpack.c.bf16 %v631, %v630
        %v652 = vpack.c.bf16 %v633, %v632
        %v653 = vpack.c.bf16 %v635, %v634
        %v654 = vpack.c.bf16 %v637, %v636
        %v655 = vpack.c.bf16 %v639, %v638
        %v656 = vld [vmem:[%s4] sm:$0xff]
        %v657 = vld [vmem:[%s4 + $0x8] sm:$0xff]
        %v658 = vld [vmem:[%s4 + $0x10] sm:$0xff]
        %v659 = vld [vmem:[%s4 + $0x18] sm:$0xff]
        %v660 = vld [vmem:[%s4 + $0x20] sm:$0xff]
        %v661 = vld [vmem:[%s4 + $0x28] sm:$0xff]
        %v662 = vld [vmem:[%s4 + $0x30] sm:$0xff]
        %v663 = vld [vmem:[%s4 + $0x38] sm:$0xff]
        %665 = vset.pattern.permute.xlu0 0
        %666 = vperm.xlu0 %665, %v656
        %v667 = vpop.permute.xlu0 %666
        %670 = vset.pattern.permute.xlu0 0
        %671 = vperm.xlu0 %670, %v657
        %v672 = vpop.permute.xlu0 %671
        %675 = vset.pattern.permute.xlu0 0
        %676 = vperm.xlu0 %675, %v658
        %v677 = vpop.permute.xlu0 %676
        %680 = vset.pattern.permute.xlu0 0
        %681 = vperm.xlu0 %680, %v659
        %v682 = vpop.permute.xlu0 %681
        %685 = vset.pattern.permute.xlu0 0
        %686 = vperm.xlu0 %685, %v660
        %v687 = vpop.permute.xlu0 %686
        %690 = vset.pattern.permute.xlu0 0
        %691 = vperm.xlu0 %690, %v661
        %v692 = vpop.permute.xlu0 %691
        %695 = vset.pattern.permute.xlu0 0
        %696 = vperm.xlu0 %695, %v662
        %v697 = vpop.permute.xlu0 %696
        %700 = vset.pattern.permute.xlu0 0
        %701 = vperm.xlu0 %700, %v663
        %v702 = vpop.permute.xlu0 %701
        %v712 = vunpack.c.l.b16 %v640
        %v713 = vunpack.c.l.b16 %v641
        %v714 = vunpack.c.l.b16 %v642
        %v715 = vunpack.c.l.b16 %v643
        %v716 = vunpack.c.l.b16 %v644
        %v717 = vunpack.c.l.b16 %v645
        %v718 = vunpack.c.l.b16 %v646
        %v719 = vunpack.c.l.b16 %v647
        %v720 = vpack.c.b16 %v713, %v712
        %v721 = vpack.c.b16 %v715, %v714
        %v722 = vpack.c.b16 %v717, %v716
        %v723 = vpack.c.b16 %v719, %v718
        %728 = vmatprep.subr.bf16.mxu0 0
        %729 = vmatpush1.bf16.msra.mxu0 %v655
        %730 = vmatprep.subr.bf16.mxu0 0
        %731 = vmatpush1.bf16.msra.mxu0 %v654
        %732 = vmatprep.subr.bf16.mxu0 0
        %733 = vmatpush1.bf16.msra.mxu0 %v653
        %734 = vmatprep.subr.bf16.mxu0 0
        %735 = vmatpush1.bf16.msra.mxu0 %v652
        %736 = vmatprep.subr.bf16.mxu0 0
        %737 = vmatpush1.bf16.msra.mxu0 %v651
        %738 = vmatprep.subr.bf16.mxu0 0
        %739 = vmatpush1.bf16.msra.mxu0 %v650
        %740 = vmatprep.subr.bf16.mxu0 0
        %741 = vmatpush1.bf16.msra.mxu0 %v649
        %742 = vmatprep.subr.bf16.mxu0 0
        %743 = vmatpush1.bf16.msra.mxu0 %v648
        %744 = vmatprep.subr.bf16.mxu0 0
        %745 = vmatpush2.bf16.msra.mxu0 0
        %746 = vmatprep.subr.bf16.mxu0 0
        %747 = vmatpush2.bf16.msra.mxu0 0
        %748 = vmatprep.subr.bf16.mxu0 0
        %749 = vmatpush2.bf16.msra.mxu0 0
        %750 = vmatprep.subr.bf16.mxu0 0
        %751 = vmatpush2.bf16.msra.mxu0 0
        %752 = vmatprep.subr.bf16.mxu0 0
        %753 = vmatpush2.bf16.msra.mxu0 0
        %754 = vmatprep.subr.bf16.mxu0 0
        %755 = vmatpush2.bf16.msra.mxu0 0
        %756 = vmatprep.subr.bf16.mxu0 0
        %757 = vmatpush2.bf16.msra.mxu0 0
        %758 = vmatprep.subr.bf16.mxu0 0
        %759 = vmatpush2.bf16.msra.mxu0 0
        %760 = vmatprep.mubr.bf16.mxu0 0
        %761 = vmatmul.mubr.bf16.gmra.mxu0 %v720
        %v762 = vpop.f32.mrf.mxu0
        %v763 = vadd.f32 %v667, %v762
        %v764 = vpop.f32.mrf.mxu0
        %v765 = vpop.f32.mrf.mxu0
        %v766 = vadd.f32 %v672, %v765
        %v767 = vpop.f32.mrf.mxu0
        %768 = vmatprep.mubr.bf16.mxu0 0
        %769 = vmatmul.mubr.bf16.gmra.mxu0 %v721
        %v770 = vpop.f32.mrf.mxu0
        %v771 = vadd.f32 %v677, %v770
        %v772 = vpop.f32.mrf.mxu0
        %v773 = vpop.f32.mrf.mxu0
        %v774 = vadd.f32 %v682, %v773
        %v775 = vpop.f32.mrf.mxu0
        %776 = vmatprep.mubr.bf16.mxu0 0
        %777 = vmatmul.mubr.bf16.gmra.mxu0 %v722
        %v778 = vpop.f32.mrf.mxu0
        %v779 = vadd.f32 %v687, %v778
        %v780 = vpop.f32.mrf.mxu0
        %v781 = vpop.f32.mrf.mxu0
        %v782 = vadd.f32 %v692, %v781
        %v783 = vpop.f32.mrf.mxu0
        %784 = vmatprep.mubr.bf16.mxu0 0
        %785 = vmatmul.mubr.bf16.gmra.mxu0 %v723
        %v786 = vpop.f32.mrf.mxu0
        %v787 = vadd.f32 %v697, %v786
        %v788 = vpop.f32.mrf.mxu0
        %v789 = vpop.f32.mrf.mxu0
        %v790 = vadd.f32 %v702, %v789
        %v791 = vpop.f32.mrf.mxu0
        %792 = vdwg.mxu0
        %v793 = vmax.f32 %v763, 0.0
        %v794 = vmax.f32 %v766, 0.0
        %v795 = vmax.f32 %v771, 0.0
        %v796 = vmax.f32 %v774, 0.0
        %v797 = vmax.f32 %v779, 0.0
        %v798 = vmax.f32 %v782, 0.0
        %v799 = vmax.f32 %v787, 0.0
        %v800 = vmax.f32 %v790, 0.0
        %v801 = vld [vmem:[%s5] sm:$0x1]
        %v802 = vpack.c.bf16 %v794, %v793
        %v803 = vpack.c.bf16 %v796, %v795
        %v804 = vpack.c.bf16 %v798, %v797
        %v805 = vpack.c.bf16 %v800, %v799
        %v806 = vld [vmem:[#allocation2] sm:$0x1]
        %808 = vset.pattern.permute.xlu0 0
        %809 = vperm.xlu0 %808, %v806
        %v810 = vpop.permute.xlu0 %809
        %v812 = vlaneseq
        %v813 = vshrl.u32 %v812, 7
        %v814 = vsub.s32 0, %v813
        %v815 = vrot.slane %v810, %v814
        %vm816 = vcmask 523264
        %v818 = vsel %vm816, %v801, 0
        %820 = vmatprep.subr.bf16.mxu0 0
        %821 = vmatpush1.bf16.msra.mxu0 0
        %822 = vmatprep.subr.bf16.mxu0 0
        %823 = vmatpush1.bf16.msra.mxu0 0
        %824 = vmatprep.subr.bf16.mxu0 0
        %825 = vmatpush1.bf16.msra.mxu0 0
        %826 = vmatprep.subr.bf16.mxu0 0
        %827 = vmatpush1.bf16.msra.mxu0 0
        %828 = vmatprep.subr.bf16.mxu0 0
        %829 = vmatpush1.bf16.msra.mxu0 %v805
        %830 = vmatprep.subr.bf16.mxu0 0
        %831 = vmatpush1.bf16.msra.mxu0 %v804
        %832 = vmatprep.subr.bf16.mxu0 0
        %833 = vmatpush1.bf16.msra.mxu0 %v803
        %834 = vmatprep.subr.bf16.mxu0 0
        %835 = vmatpush1.bf16.msra.mxu0 %v802
        %836 = vmatprep.subr.bf16.mxu0 0
        %837 = vmatpush2.bf16.msra.mxu0 0
        %838 = vmatprep.subr.bf16.mxu0 0
        %839 = vmatpush2.bf16.msra.mxu0 0
        %840 = vmatprep.subr.bf16.mxu0 0
        %841 = vmatpush2.bf16.msra.mxu0 0
        %842 = vmatprep.subr.bf16.mxu0 0
        %843 = vmatpush2.bf16.msra.mxu0 0
        %844 = vmatprep.subr.bf16.mxu0 0
        %845 = vmatpush2.bf16.msra.mxu0 0
        %846 = vmatprep.subr.bf16.mxu0 0
        %847 = vmatpush2.bf16.msra.mxu0 0
        %848 = vmatprep.subr.bf16.mxu0 0
        %849 = vmatpush2.bf16.msra.mxu0 0
        %850 = vmatprep.subr.bf16.mxu0 0
        %851 = vmatpush2.bf16.msra.mxu0 0
        %852 = vmatprep.mubr.bf16.mxu0 0
        %853 = vmatmul.mubr.bf16.gmra.mxu0 %v818
        %v854 = vpop.f32.mrf.mxu0
        %v855 = vadd.f32 %v815, %v854
        %v856 = vpop.f32.mrf.mxu0
        %v857 = vpop.f32.mrf.mxu0
        %v858 = vpop.f32.mrf.mxu0
        %859 = vdwg.mxu0
        %v860 = vsub.f32 0.0, %v855
        %v861 = vmul.f32 %v860, 1.442695
        %v862 = vpow.pop %v861
        %v863 = vadd.f32 %v862, 1.0
        %v864 = vrcp.pop %v863
        %v865 = vmul.f32 1.0, %v864
        %866 = vst [vmem:[%s332] sm:$0x1] %v865
        %s867 = sand.u32 %s183, 1
        %s868 = scalar_lea.sflag [#allocation5], %s867
        %s869 = sand.u32 %s183, 1
        %s870 = scalar_lea.vmem [#allocation4], %s869
        // Predicated region
        $region90: #{tpu_custom_call.1} parent=84 // pred_check
          %p871 = pneg %p193
        $region91: #{tpu_custom_call.1} parent=84 // pred_check_branch
          %873 = sbr.rel (%p871) target = $region93
        $region92: #{tpu_custom_call.1} parent=84 // pred_region
          %s875 = ssub.s32 16, 16
          %876 = vsyncadd %s868, %s875
          %s877 = smul.addr %s23, 16
          %s878 = scalar_lea.hbm %s7, %s877
          %s880 = sshll.u32 %s870, 4
          %s881 = int_to_ptr.vmem [resolvable:$true] %s880
          %883 = dma.vmem_to_hbm [thread:$0]  %s881, 16, %s878, %s868
        $region93: #{tpu_custom_call.1} parent=84 // pred_fallthru
          _
      $region85: #{tpu_custom_call.1} parent=5 // pred_fallthru
        _
      %p884 = scmp.le.s32.totalorder 2, %s18
      // Predicated region
      $region94: #{tpu_custom_call.1} parent=5 // pred_check
        %p885 = pneg %p884
      $region95: #{tpu_custom_call.1} parent=5 // pred_check_branch
        %887 = sbr.rel (%p885) target = $region97
      $region96: #{tpu_custom_call.1} parent=5 // pred_region
        %s888 = ssub.s32 %s18, 2
        // Predicated region
        $region98: #{tpu_custom_call.1} parent=96 // pred_check
          %p889 = pneg %p199
        $region99: #{tpu_custom_call.1} parent=96 // pred_check_branch
          %891 = sbr.rel (%p889) target = $region101
        $region100: #{tpu_custom_call.1} parent=96 // pred_region
          %s892 = sand.u32 %s184, 1
          %s893 = scalar_lea.sflag [#allocation5], %s892
          %s894 = sand.u32 %s184, 1
          %s895 = scalar_lea.vmem [#allocation4], %s894
          %896 = dma.done %s893, 16
        $region101: #{tpu_custom_call.1} parent=96 // pred_fallthru
          _
      $region97: #{tpu_custom_call.1} parent=5 // pred_fallthru
        _
    $region6: #{tpu_custom_call.1} parent=1 // loop_footer
      %s22 = sadd.s32 1, %s18
    $region7: #{tpu_custom_call.1} parent=1 // loop_footer_branch
      %17 = sbr.rel target = $region3
    $region8: #{tpu_custom_call.1} parent=1 // loop_exit
      _
    %897 = vsyncpa [#allocation5], 1
    %s898 = scalar_lea.sflag [#allocation5], 1
    %899 = vsyncpa %s898, 1

</llo_original>
